<compile_context>
chip_gen: v5e
topology: v5e:2x2
jax: 0.10.0
libtpu: 0.0.40
codegen_flags: <defaults>
</compile_context>

<pallas_src>
import math

import jax
import jax.numpy as jnp
from jax.experimental import pallas as pl
from jax.experimental.pallas import tpu as pltpu  # noqa: F401  (TPU-specific tuning hooks)

# ---------------- model config (small, consistent with the module) ------------
B, S, H = 2, 8, 32           # batch, seq, hidden_size
NUM_HEADS = 4
HEAD_DIM = H // NUM_HEADS
INTERMEDIATE = 64            # intermediate_size
LN_EPS = 1e-12               # layer_norm_eps (BERT/ERNIE default)
NEG_INF = -1e9
BS = B * S
SLAB_LANES = 128             # lane width of the packed parameter slabs
W_ROWS = 4 * H + INTERMEDIATE          # 192 rows in the stacked weight slab
B_ROWS = 9                              # rows in the bias/LN slab


# ---------------- numeric helpers (run inside the kernel) ---------------------
def _erf(x):
    # Abramowitz & Stegun 7.1.26 rational approximation (|err| < 1.5e-7, i.e.
    # at the f32 resolution floor).  Used for exact (erf) GELU like nn.GELU().
    # TODO(synk): switch to jax.lax.erf / tanh-GELU once its Mosaic lowering is
    # confirmed on-hardware (routes work to the EUP slot).
    a1, a2, a3, a4, a5 = (0.254829592, -0.284496736, 1.421413741,
                          -1.453152027, 1.061405429)
    p = 0.3275911
    sign = jnp.where(x >= 0.0, 1.0, -1.0)
    ax = jnp.abs(x)
    t = 1.0 / (1.0 + p * ax)
    poly = ((((a5 * t + a4) * t + a3) * t + a2) * t + a1) * t
    return sign * (1.0 - poly * jnp.exp(-ax * ax))


def _gelu_exact(x):
    return 0.5 * x * (1.0 + _erf(x * (1.0 / math.sqrt(2.0))))


def _layernorm(x, gamma, beta):
    mean = jnp.mean(x, axis=-1, keepdims=True)
    var = jnp.mean((x - mean) ** 2, axis=-1, keepdims=True)
    return (x - mean) * jax.lax.rsqrt(var + LN_EPS) * gamma + beta


# ---------------- single fused kernel: whole ErnieLayer forward ----------------
def ernie_layer_kernel(data_ref, w_ref, b_ref, out_ref):
    # ---- unpack the data slab -------------------------------------------------
    x = data_ref[0:BS, :]                       # (BS, H) rows = flattened (batch, seq)
    ent = data_ref[BS:2 * BS, :]                # (BS, H)
    keypad = data_ref[2 * BS:2 * BS + 1, 0:BS]  # (1, BS) float, 1.0 = padded key

    # ---- bias / LN slab (one tiny load, then vreg slices) ---------------------
    bias = b_ref[...]                           # (9, 128)
    b_qkv = bias[0:1, 0:3 * H]
    b_o = bias[1:2, 0:H]
    b_d = bias[2:3, 0:H]
    ln1_g = bias[3:4, 0:H]
    ln1_b = bias[4:5, 0:H]
    b_i = bias[5:6, 0:INTERMEDIATE]
    b_o2 = bias[6:7, 0:H]
    ln2_g = bias[7:8, 0:H]
    ln2_b = bias[8:9, 0:H]

    # ---- additive attention mask, built fully in-kernel -----------------------
    #   invalid key <=> different batch (block-diagonal) OR padded key.
    r_iota = jax.lax.broadcasted_iota(jnp.int32, (BS, BS), 0)
    c_iota = jax.lax.broadcasted_iota(jnp.int32, (BS, BS), 1)
    if (S & (S - 1)) == 0:                      # trace-time branch
        shift = S.bit_length() - 1
        rbid = r_iota >> shift
        cbid = c_iota >> shift
    else:
        rbid = r_iota // S
        cbid = c_iota // S
    invalid = jnp.logical_or(rbid != cbid, keypad > 0.5)
    add_mask = jnp.where(invalid, NEG_INF, 0.0)  # (BS, BS) f32

    # ---- fused QKV projection: one MXU push (16,32)@(32,96) -------------------
    # 1/sqrt(head_dim) is pre-folded into the Q columns of the weight/bias slab.
    qkv = jnp.dot(x, w_ref[0:H, 0:3 * H],
                  preferred_element_type=jnp.float32) + b_qkv      # (BS, 3H)

    # ---- per-head attention with accumulated out-projection -------------------
    # attn = sum_h (softmax(q_h k_h^T + mask) v_h) @ Wo[h*d:(h+1)*d, :]  + bo + ent
    attn = ent + b_o                                               # (BS, H) f32
    for h in range(NUM_HEADS):                  # static unrolled, tiny head dim
        lo = h * HEAD_DIM
        qh = qkv[:, lo:lo + HEAD_DIM]                              # (BS, d) pre-scaled
        kh = qkv[:, H + lo:H + lo + HEAD_DIM]                      # (BS, d)
        vh = qkv[:, 2 * H + lo:2 * H + lo + HEAD_DIM]              # (BS, d)
        s = jax.lax.dot_general(qh, kh, (((1,), (1,)), ((), ())),
                                preferred_element_type=jnp.float32)  # (BS, BS)
        s = s + add_mask
        s = s - jnp.max(s, axis=-1, keepdims=True)                 # stable softmax
        p = jnp.exp(s)
        p = p * pl.reciprocal(jnp.sum(p, axis=-1, keepdims=True), approx=True)
        ctx_h = jnp.dot(p, vh, preferred_element_type=jnp.float32)  # (BS, d)
        # 8-row, sublane-aligned slice of the packed out-proj weight.
        attn = attn + jnp.dot(ctx_h, w_ref[H + lo:H + lo + HEAD_DIM, 0:H],
                              preferred_element_type=jnp.float32)

    # ---- dense + add&norm  (dropout = identity) --------------------------------
    d = jnp.dot(attn, w_ref[2 * H:3 * H, 0:H],
                preferred_element_type=jnp.float32) + b_d
    attn_out = _layernorm(d + x, ln1_g, ln1_b)

    # ---- intermediate (GELU) + output + add&norm  (dropout = identity) ---------
    hmid = jnp.dot(attn_out, w_ref[3 * H:4 * H, 0:INTERMEDIATE],
                   preferred_element_type=jnp.float32) + b_i
    hmid = _gelu_exact(hmid)
    y = jnp.dot(hmid, w_ref[4 * H:4 * H + INTERMEDIATE, 0:H],
                preferred_element_type=jnp.float32) + b_o2
    out = _layernorm(y + attn_out, ln2_g, ln2_b)

    out_ref[...] = out.astype(out_ref.dtype)


# ---------------- wrapper ------------------------------------------------------
def ernie_layer(hidden_states, attention_mask, entity_embeddings, w_slab, b_slab):
    """Full ErnieLayer forward.

    hidden_states/entity_embeddings: f32 [B, S, H]
    attention_mask: bool [B, S], True = padded key (nn.MultiheadAttention
    key_padding_mask semantics).
    w_slab/b_slab: packed parameter slabs from pack_params().
    """
    Bx, Sx, Hx = hidden_states.shape
    n = Bx * Sx
    # TODO(synk): generalize the key-padding row packing for B*S > H.
    assert n <= Hx, "key-padding row packing requires B*S <= hidden_size"
    x2 = hidden_states.reshape(n, Hx)
    ent2 = entity_embeddings.reshape(n, Hx)
    keypad_row = jnp.zeros((1, Hx), hidden_states.dtype).at[0, :n].set(
        attention_mask.reshape(-1).astype(hidden_states.dtype))
    data = jnp.concatenate([x2, ent2, keypad_row], axis=0)   # (2n+1, Hx)

    out2 = pl.pallas_call(
        ernie_layer_kernel,
        out_shape=jax.ShapeDtypeStruct((n, Hx), hidden_states.dtype),
    )(data, w_slab, b_slab)
    return out2.reshape(Bx, Sx, Hx)


# ---------------- deterministic parameter init + one-time packing ---------------
def init_params(key):
    ks = jax.random.split(key, 10)

    def w(k, shape):
        return (0.02 * jax.random.normal(k, shape)).astype(jnp.float32)

    # NOTE: weight layout here is [in, out]; PyTorch nn.Linear / nn.MultiheadAttention
    # store [out, in] -- transpose (and check q|k|v packing order) when loading
    # real checkpoints.
    return {
        "w_qkv": w(ks[0], (H, 3 * H)), "b_qkv": w(ks[1], (1, 3 * H)),
        "wo": w(ks[2], (H, H)), "bo": w(ks[3], (1, H)),
        "wd": w(ks[4], (H, H)), "bd": w(ks[5], (1, H)),
        "ln1_g": jnp.ones((1, H), jnp.float32), "ln1_b": jnp.zeros((1, H), jnp.float32),
        "wi": w(ks[6], (H, INTERMEDIATE)), "bi": w(ks[7], (1, INTERMEDIATE)),
        "wo2": w(ks[8], (INTERMEDIATE, H)), "bo2": w(ks[9], (1, H)),
        "ln2_g": jnp.ones((1, H), jnp.float32), "ln2_b": jnp.zeros((1, H), jnp.float32),
    }


def pack_params(p):
    """One-time transform: fold the attention scale and pack 19 params -> 2 slabs."""
    scale = 1.0 / math.sqrt(HEAD_DIM)
    w_qkv = p["w_qkv"].at[:, :H].multiply(scale)   # fold 1/sqrt(d) into Q columns
    b_qkv = p["b_qkv"].at[:, :H].multiply(scale)

    w_slab = jnp.zeros((W_ROWS, SLAB_LANES), jnp.float32)
    w_slab = w_slab.at[0:H, 0:3 * H].set(w_qkv)
    w_slab = w_slab.at[H:2 * H, 0:H].set(p["wo"])
    w_slab = w_slab.at[2 * H:3 * H, 0:H].set(p["wd"])
    w_slab = w_slab.at[3 * H:4 * H, 0:INTERMEDIATE].set(p["wi"])
    w_slab = w_slab.at[4 * H:4 * H + INTERMEDIATE, 0:H].set(p["wo2"])

    b_slab = jnp.zeros((B_ROWS, SLAB_LANES), jnp.float32)
    rows = [(0, b_qkv, 3 * H), (1, p["bo"], H), (2, p["bd"], H),
            (3, p["ln1_g"], H), (4, p["ln1_b"], H), (5, p["bi"], INTERMEDIATE),
            (6, p["bo2"], H), (7, p["ln2_g"], H), (8, p["ln2_b"], H)]
    for r, v, width in rows:
        b_slab = b_slab.at[r:r + 1, 0:width].set(v)
    return w_slab, b_slab


if __name__ == "__main__":
    key = jax.random.PRNGKey(0)
    k_p, k_x, k_e = jax.random.split(key, 3)
    params = init_params(k_p)
    w_slab, b_slab = pack_params(params)
    w_slab, b_slab = jax.block_until_ready((w_slab, b_slab))

    hidden_states = jax.random.normal(k_x, (B, S, H), jnp.float32)
    entity_embeddings = jax.random.normal(k_e, (B, S, H), jnp.float32)
    # key_padding_mask semantics: True = padded key (ignored by attention)
    attention_mask = jnp.zeros((B, S), dtype=bool).at[:, S - 2:].set(True)

    fwd = jax.jit(ernie_layer)
    out = fwd(hidden_states, attention_mask, entity_embeddings, w_slab, b_slab)
    out = jax.block_until_ready(out)

    assert out.shape == (B, S, H), out.shape
    assert bool(jnp.all(jnp.isfinite(out)))
    print("KERNEL_OK")
</pallas_src>

<mosaic_0001>
module attributes {stable_mosaic.version = 11 : i64} {
  func.func @ernie_layer_kernel(%arg0: memref<33x32xf32, #tpu.memory_space<vmem>>, %arg1: memref<192x128xf32, #tpu.memory_space<vmem>>, %arg2: memref<9x128xf32, #tpu.memory_space<vmem>>, %arg3: memref<16x32xf32, #tpu.memory_space<vmem>>) attributes {dimension_semantics = [], scalar_prefetch = 0 : i64, scratch_operands = 0 : i64, tpu.core_type = #tpu.core_type<tc>} {
    %c0 = arith.constant 0 : index
    %c0_0 = arith.constant 0 : index
    %0 = vector.load %arg0[%c0, %c0_0] : memref<33x32xf32, #tpu.memory_space<vmem>>, vector<16x32xf32>
    %c16 = arith.constant 16 : index
    %c0_1 = arith.constant 0 : index
    %1 = vector.load %arg0[%c16, %c0_1] : memref<33x32xf32, #tpu.memory_space<vmem>>, vector<16x32xf32>
    %c32 = arith.constant 32 : index
    %c0_2 = arith.constant 0 : index
    %2 = vector.load %arg0[%c32, %c0_2] : memref<33x32xf32, #tpu.memory_space<vmem>>, vector<1x16xf32>
    %c0_3 = arith.constant 0 : index
    %c0_4 = arith.constant 0 : index
    %3 = vector.load %arg2[%c0_3, %c0_4] : memref<9x128xf32, #tpu.memory_space<vmem>>, vector<9x128xf32>
    %4 = vector.extract_strided_slice %3 {offsets = [0, 0], sizes = [1, 96], strides = [1, 1]} : vector<9x128xf32> to vector<1x96xf32>
    %5 = vector.extract_strided_slice %3 {offsets = [1, 0], sizes = [1, 32], strides = [1, 1]} : vector<9x128xf32> to vector<1x32xf32>
    %6 = vector.extract_strided_slice %3 {offsets = [2, 0], sizes = [1, 32], strides = [1, 1]} : vector<9x128xf32> to vector<1x32xf32>
    %7 = vector.extract_strided_slice %3 {offsets = [3, 0], sizes = [1, 32], strides = [1, 1]} : vector<9x128xf32> to vector<1x32xf32>
    %8 = vector.extract_strided_slice %3 {offsets = [4, 0], sizes = [1, 32], strides = [1, 1]} : vector<9x128xf32> to vector<1x32xf32>
    %9 = vector.extract_strided_slice %3 {offsets = [5, 0], sizes = [1, 64], strides = [1, 1]} : vector<9x128xf32> to vector<1x64xf32>
    %10 = vector.extract_strided_slice %3 {offsets = [6, 0], sizes = [1, 32], strides = [1, 1]} : vector<9x128xf32> to vector<1x32xf32>
    %11 = vector.extract_strided_slice %3 {offsets = [7, 0], sizes = [1, 32], strides = [1, 1]} : vector<9x128xf32> to vector<1x32xf32>
    %12 = vector.extract_strided_slice %3 {offsets = [8, 0], sizes = [1, 32], strides = [1, 1]} : vector<9x128xf32> to vector<1x32xf32>
    %13 = tpu.iota {dimensions = array<i32: 0>} : vector<16x16xi32>
    %14 = tpu.iota {dimensions = array<i32: 1>} : vector<16x16xi32>
    %c3_i32 = arith.constant 3 : i32
    %15 = vector.broadcast %c3_i32 : i32 to vector<16x16xi32>
    %16 = arith.shrsi %13, %15 : vector<16x16xi32>
    %c3_i32_5 = arith.constant 3 : i32
    %17 = vector.broadcast %c3_i32_5 : i32 to vector<16x16xi32>
    %18 = arith.shrsi %14, %17 : vector<16x16xi32>
    %19 = arith.cmpi ne, %16, %18 : vector<16x16xi32>
    %cst = arith.constant 5.000000e-01 : f32
    %20 = vector.broadcast %cst : f32 to vector<1x16xf32>
    %21 = arith.cmpf ogt, %2, %20 : vector<1x16xf32>
    %22 = vector.broadcast %21 : vector<1x16xi1> to vector<16x16xi1>
    %23 = arith.ori %19, %22 : vector<16x16xi1>
    %cst_6 = arith.constant -1.000000e+09 : f32
    %cst_7 = arith.constant 0.000000e+00 : f32
    %24 = vector.broadcast %cst_6 : f32 to vector<16x16xf32>
    %25 = vector.broadcast %cst_7 : f32 to vector<16x16xf32>
    %26 = arith.select %23, %24, %25 : vector<16x16xi1>, vector<16x16xf32>
    %c0_8 = arith.constant 0 : index
    %c0_9 = arith.constant 0 : index
    %27 = vector.load %arg1[%c0_8, %c0_9] : memref<192x128xf32, #tpu.memory_space<vmem>>, vector<32x96xf32>
    %cst_10 = arith.constant dense<0.000000e+00> : vector<16x96xf32>
    %28 = tpu.matmul %0, %27, %cst_10 {dimension_numbers = #tpu.dot_dimension_numbers<[1], [0], [0], [1], [0, 0, 1, 1], [], []>} : vector<16x32xf32>, vector<32x96xf32>, vector<16x96xf32> -> vector<16x96xf32>
    %29 = vector.broadcast %4 : vector<1x96xf32> to vector<16x96xf32>
    %30 = arith.addf %28, %29 : vector<16x96xf32>
    %31 = vector.broadcast %5 : vector<1x32xf32> to vector<16x32xf32>
    %32 = arith.addf %1, %31 : vector<16x32xf32>
    %33 = vector.extract_strided_slice %30 {offsets = [0, 0], sizes = [16, 8], strides = [1, 1]} : vector<16x96xf32> to vector<16x8xf32>
    %34 = vector.extract_strided_slice %30 {offsets = [0, 32], sizes = [16, 8], strides = [1, 1]} : vector<16x96xf32> to vector<16x8xf32>
    %35 = vector.extract_strided_slice %30 {offsets = [0, 64], sizes = [16, 8], strides = [1, 1]} : vector<16x96xf32> to vector<16x8xf32>
    %cst_11 = arith.constant dense<0.000000e+00> : vector<16x16xf32>
    %36 = tpu.matmul %33, %34, %cst_11 {dimension_numbers = #tpu.dot_dimension_numbers<[1], [1], [0], [0], [0, 0, 1, 0], [], []>} : vector<16x8xf32>, vector<16x8xf32>, vector<16x16xf32> -> vector<16x16xf32>
    %37 = arith.addf %36, %26 : vector<16x16xf32>
    %cst_12 = arith.constant dense<0xFF800000> : vector<16xf32>
    %38 = vector.multi_reduction <maximumf>, %37, %cst_12 [1] : vector<16x16xf32> to vector<16xf32>
    %39 = vector.shape_cast %38 : vector<16xf32> to vector<16x1xf32>
    %40 = vector.broadcast %39 : vector<16x1xf32> to vector<16x16xf32>
    %41 = arith.subf %37, %40 : vector<16x16xf32>
    %42 = math.exp %41 : vector<16x16xf32>
    %cst_13 = arith.constant dense<0.000000e+00> : vector<16xf32>
    %43 = vector.multi_reduction <add>, %42, %cst_13 [1] : vector<16x16xf32> to vector<16xf32>
    %44 = vector.shape_cast %43 : vector<16xf32> to vector<16x1xf32>
    %45 = tpu.reciprocal %44 {approx = true} : vector<16x1xf32> -> vector<16x1xf32>
    %46 = vector.broadcast %45 : vector<16x1xf32> to vector<16x16xf32>
    %47 = arith.mulf %42, %46 : vector<16x16xf32>
    %cst_14 = arith.constant dense<0.000000e+00> : vector<16x8xf32>
    %48 = tpu.matmul %47, %35, %cst_14 {dimension_numbers = #tpu.dot_dimension_numbers<[1], [0], [0], [1], [0, 0, 1, 1], [], []>} : vector<16x16xf32>, vector<16x8xf32>, vector<16x8xf32> -> vector<16x8xf32>
    %c32_15 = arith.constant 32 : index
    %c0_16 = arith.constant 0 : index
    %49 = vector.load %arg1[%c32_15, %c0_16] : memref<192x128xf32, #tpu.memory_space<vmem>>, vector<8x32xf32>
    %cst_17 = arith.constant dense<0.000000e+00> : vector<16x32xf32>
    %50 = tpu.matmul %48, %49, %cst_17 {dimension_numbers = #tpu.dot_dimension_numbers<[1], [0], [0], [1], [0, 0, 1, 1], [], []>} : vector<16x8xf32>, vector<8x32xf32>, vector<16x32xf32> -> vector<16x32xf32>
    %51 = arith.addf %32, %50 : vector<16x32xf32>
    %52 = vector.extract_strided_slice %30 {offsets = [0, 8], sizes = [16, 8], strides = [1, 1]} : vector<16x96xf32> to vector<16x8xf32>
    %53 = vector.extract_strided_slice %30 {offsets = [0, 40], sizes = [16, 8], strides = [1, 1]} : vector<16x96xf32> to vector<16x8xf32>
    %54 = vector.extract_strided_slice %30 {offsets = [0, 72], sizes = [16, 8], strides = [1, 1]} : vector<16x96xf32> to vector<16x8xf32>
    %cst_18 = arith.constant dense<0.000000e+00> : vector<16x16xf32>
    %55 = tpu.matmul %52, %53, %cst_18 {dimension_numbers = #tpu.dot_dimension_numbers<[1], [1], [0], [0], [0, 0, 1, 0], [], []>} : vector<16x8xf32>, vector<16x8xf32>, vector<16x16xf32> -> vector<16x16xf32>
    %56 = arith.addf %55, %26 : vector<16x16xf32>
    %cst_19 = arith.constant dense<0xFF800000> : vector<16xf32>
    %57 = vector.multi_reduction <maximumf>, %56, %cst_19 [1] : vector<16x16xf32> to vector<16xf32>
    %58 = vector.shape_cast %57 : vector<16xf32> to vector<16x1xf32>
    %59 = vector.broadcast %58 : vector<16x1xf32> to vector<16x16xf32>
    %60 = arith.subf %56, %59 : vector<16x16xf32>
    %61 = math.exp %60 : vector<16x16xf32>
    %cst_20 = arith.constant dense<0.000000e+00> : vector<16xf32>
    %62 = vector.multi_reduction <add>, %61, %cst_20 [1] : vector<16x16xf32> to vector<16xf32>
    %63 = vector.shape_cast %62 : vector<16xf32> to vector<16x1xf32>
    %64 = tpu.reciprocal %63 {approx = true} : vector<16x1xf32> -> vector<16x1xf32>
    %65 = vector.broadcast %64 : vector<16x1xf32> to vector<16x16xf32>
    %66 = arith.mulf %61, %65 : vector<16x16xf32>
    %cst_21 = arith.constant dense<0.000000e+00> : vector<16x8xf32>
    %67 = tpu.matmul %66, %54, %cst_21 {dimension_numbers = #tpu.dot_dimension_numbers<[1], [0], [0], [1], [0, 0, 1, 1], [], []>} : vector<16x16xf32>, vector<16x8xf32>, vector<16x8xf32> -> vector<16x8xf32>
    %c40 = arith.constant 40 : index
    %c0_22 = arith.constant 0 : index
    %68 = vector.load %arg1[%c40, %c0_22] : memref<192x128xf32, #tpu.memory_space<vmem>>, vector<8x32xf32>
    %cst_23 = arith.constant dense<0.000000e+00> : vector<16x32xf32>
    %69 = tpu.matmul %67, %68, %cst_23 {dimension_numbers = #tpu.dot_dimension_numbers<[1], [0], [0], [1], [0, 0, 1, 1], [], []>} : vector<16x8xf32>, vector<8x32xf32>, vector<16x32xf32> -> vector<16x32xf32>
    %70 = arith.addf %51, %69 : vector<16x32xf32>
    %71 = vector.extract_strided_slice %30 {offsets = [0, 16], sizes = [16, 8], strides = [1, 1]} : vector<16x96xf32> to vector<16x8xf32>
    %72 = vector.extract_strided_slice %30 {offsets = [0, 48], sizes = [16, 8], strides = [1, 1]} : vector<16x96xf32> to vector<16x8xf32>
    %73 = vector.extract_strided_slice %30 {offsets = [0, 80], sizes = [16, 8], strides = [1, 1]} : vector<16x96xf32> to vector<16x8xf32>
    %cst_24 = arith.constant dense<0.000000e+00> : vector<16x16xf32>
    %74 = tpu.matmul %71, %72, %cst_24 {dimension_numbers = #tpu.dot_dimension_numbers<[1], [1], [0], [0], [0, 0, 1, 0], [], []>} : vector<16x8xf32>, vector<16x8xf32>, vector<16x16xf32> -> vector<16x16xf32>
    %75 = arith.addf %74, %26 : vector<16x16xf32>
    %cst_25 = arith.constant dense<0xFF800000> : vector<16xf32>
    %76 = vector.multi_reduction <maximumf>, %75, %cst_25 [1] : vector<16x16xf32> to vector<16xf32>
    %77 = vector.shape_cast %76 : vector<16xf32> to vector<16x1xf32>
    %78 = vector.broadcast %77 : vector<16x1xf32> to vector<16x16xf32>
    %79 = arith.subf %75, %78 : vector<16x16xf32>
    %80 = math.exp %79 : vector<16x16xf32>
    %cst_26 = arith.constant dense<0.000000e+00> : vector<16xf32>
    %81 = vector.multi_reduction <add>, %80, %cst_26 [1] : vector<16x16xf32> to vector<16xf32>
    %82 = vector.shape_cast %81 : vector<16xf32> to vector<16x1xf32>
    %83 = tpu.reciprocal %82 {approx = true} : vector<16x1xf32> -> vector<16x1xf32>
    %84 = vector.broadcast %83 : vector<16x1xf32> to vector<16x16xf32>
    %85 = arith.mulf %80, %84 : vector<16x16xf32>
    %cst_27 = arith.constant dense<0.000000e+00> : vector<16x8xf32>
    %86 = tpu.matmul %85, %73, %cst_27 {dimension_numbers = #tpu.dot_dimension_numbers<[1], [0], [0], [1], [0, 0, 1, 1], [], []>} : vector<16x16xf32>, vector<16x8xf32>, vector<16x8xf32> -> vector<16x8xf32>
    %c48 = arith.constant 48 : index
    %c0_28 = arith.constant 0 : index
    %87 = vector.load %arg1[%c48, %c0_28] : memref<192x128xf32, #tpu.memory_space<vmem>>, vector<8x32xf32>
    %cst_29 = arith.constant dense<0.000000e+00> : vector<16x32xf32>
    %88 = tpu.matmul %86, %87, %cst_29 {dimension_numbers = #tpu.dot_dimension_numbers<[1], [0], [0], [1], [0, 0, 1, 1], [], []>} : vector<16x8xf32>, vector<8x32xf32>, vector<16x32xf32> -> vector<16x32xf32>
    %89 = arith.addf %70, %88 : vector<16x32xf32>
    %90 = vector.extract_strided_slice %30 {offsets = [0, 24], sizes = [16, 8], strides = [1, 1]} : vector<16x96xf32> to vector<16x8xf32>
    %91 = vector.extract_strided_slice %30 {offsets = [0, 56], sizes = [16, 8], strides = [1, 1]} : vector<16x96xf32> to vector<16x8xf32>
    %92 = vector.extract_strided_slice %30 {offsets = [0, 88], sizes = [16, 8], strides = [1, 1]} : vector<16x96xf32> to vector<16x8xf32>
    %cst_30 = arith.constant dense<0.000000e+00> : vector<16x16xf32>
    %93 = tpu.matmul %90, %91, %cst_30 {dimension_numbers = #tpu.dot_dimension_numbers<[1], [1], [0], [0], [0, 0, 1, 0], [], []>} : vector<16x8xf32>, vector<16x8xf32>, vector<16x16xf32> -> vector<16x16xf32>
    %94 = arith.addf %93, %26 : vector<16x16xf32>
    %cst_31 = arith.constant dense<0xFF800000> : vector<16xf32>
    %95 = vector.multi_reduction <maximumf>, %94, %cst_31 [1] : vector<16x16xf32> to vector<16xf32>
    %96 = vector.shape_cast %95 : vector<16xf32> to vector<16x1xf32>
    %97 = vector.broadcast %96 : vector<16x1xf32> to vector<16x16xf32>
    %98 = arith.subf %94, %97 : vector<16x16xf32>
    %99 = math.exp %98 : vector<16x16xf32>
    %cst_32 = arith.constant dense<0.000000e+00> : vector<16xf32>
    %100 = vector.multi_reduction <add>, %99, %cst_32 [1] : vector<16x16xf32> to vector<16xf32>
    %101 = vector.shape_cast %100 : vector<16xf32> to vector<16x1xf32>
    %102 = tpu.reciprocal %101 {approx = true} : vector<16x1xf32> -> vector<16x1xf32>
    %103 = vector.broadcast %102 : vector<16x1xf32> to vector<16x16xf32>
    %104 = arith.mulf %99, %103 : vector<16x16xf32>
    %cst_33 = arith.constant dense<0.000000e+00> : vector<16x8xf32>
    %105 = tpu.matmul %104, %92, %cst_33 {dimension_numbers = #tpu.dot_dimension_numbers<[1], [0], [0], [1], [0, 0, 1, 1], [], []>} : vector<16x16xf32>, vector<16x8xf32>, vector<16x8xf32> -> vector<16x8xf32>
    %c56 = arith.constant 56 : index
    %c0_34 = arith.constant 0 : index
    %106 = vector.load %arg1[%c56, %c0_34] : memref<192x128xf32, #tpu.memory_space<vmem>>, vector<8x32xf32>
    %cst_35 = arith.constant dense<0.000000e+00> : vector<16x32xf32>
    %107 = tpu.matmul %105, %106, %cst_35 {dimension_numbers = #tpu.dot_dimension_numbers<[1], [0], [0], [1], [0, 0, 1, 1], [], []>} : vector<16x8xf32>, vector<8x32xf32>, vector<16x32xf32> -> vector<16x32xf32>
    %108 = arith.addf %89, %107 : vector<16x32xf32>
    %c64 = arith.constant 64 : index
    %c0_36 = arith.constant 0 : index
    %109 = vector.load %arg1[%c64, %c0_36] : memref<192x128xf32, #tpu.memory_space<vmem>>, vector<32x32xf32>
    %cst_37 = arith.constant dense<0.000000e+00> : vector<16x32xf32>
    %110 = tpu.matmul %108, %109, %cst_37 {dimension_numbers = #tpu.dot_dimension_numbers<[1], [0], [0], [1], [0, 0, 1, 1], [], []>} : vector<16x32xf32>, vector<32x32xf32>, vector<16x32xf32> -> vector<16x32xf32>
    %111 = vector.broadcast %6 : vector<1x32xf32> to vector<16x32xf32>
    %112 = arith.addf %110, %111 : vector<16x32xf32>
    %113 = arith.addf %112, %0 : vector<16x32xf32>
    %cst_38 = arith.constant dense<0.000000e+00> : vector<16xf32>
    %114 = vector.multi_reduction <add>, %113, %cst_38 [1] : vector<16x32xf32> to vector<16xf32>
    %115 = vector.shape_cast %114 : vector<16xf32> to vector<16x1xf32>
    %cst_39 = arith.constant 3.200000e+01 : f32
    %116 = vector.broadcast %cst_39 : f32 to vector<16x1xf32>
    %117 = arith.divf %115, %116 : vector<16x1xf32>
    %118 = vector.broadcast %117 : vector<16x1xf32> to vector<16x32xf32>
    %119 = arith.subf %113, %118 : vector<16x32xf32>
    %120 = arith.mulf %119, %119 : vector<16x32xf32>
    %cst_40 = arith.constant dense<0.000000e+00> : vector<16xf32>
    %121 = vector.multi_reduction <add>, %120, %cst_40 [1] : vector<16x32xf32> to vector<16xf32>
    %122 = vector.shape_cast %121 : vector<16xf32> to vector<16x1xf32>
    %cst_41 = arith.constant 3.200000e+01 : f32
    %123 = vector.broadcast %cst_41 : f32 to vector<16x1xf32>
    %124 = arith.divf %122, %123 : vector<16x1xf32>
    %125 = vector.broadcast %117 : vector<16x1xf32> to vector<16x32xf32>
    %126 = arith.subf %113, %125 : vector<16x32xf32>
    %cst_42 = arith.constant 9.99999996E-13 : f32
    %127 = vector.broadcast %cst_42 : f32 to vector<16x1xf32>
    %128 = arith.addf %124, %127 : vector<16x1xf32>
    %129 = math.rsqrt %128 : vector<16x1xf32>
    %130 = vector.broadcast %129 : vector<16x1xf32> to vector<16x32xf32>
    %131 = arith.mulf %126, %130 : vector<16x32xf32>
    %132 = vector.broadcast %7 : vector<1x32xf32> to vector<16x32xf32>
    %133 = arith.mulf %131, %132 : vector<16x32xf32>
    %134 = vector.broadcast %8 : vector<1x32xf32> to vector<16x32xf32>
    %135 = arith.addf %133, %134 : vector<16x32xf32>
    %c96 = arith.constant 96 : index
    %c0_43 = arith.constant 0 : index
    %136 = vector.load %arg1[%c96, %c0_43] : memref<192x128xf32, #tpu.memory_space<vmem>>, vector<32x64xf32>
    %cst_44 = arith.constant dense<0.000000e+00> : vector<16x64xf32>
    %137 = tpu.matmul %135, %136, %cst_44 {dimension_numbers = #tpu.dot_dimension_numbers<[1], [0], [0], [1], [0, 0, 1, 1], [], []>} : vector<16x32xf32>, vector<32x64xf32>, vector<16x64xf32> -> vector<16x64xf32>
    %138 = vector.broadcast %9 : vector<1x64xf32> to vector<16x64xf32>
    %139 = arith.addf %137, %138 : vector<16x64xf32>
    %cst_45 = arith.constant 5.000000e-01 : f32
    %140 = vector.broadcast %cst_45 : f32 to vector<16x64xf32>
    %141 = arith.mulf %140, %139 : vector<16x64xf32>
    %cst_46 = arith.constant 0.707106769 : f32
    %142 = vector.broadcast %cst_46 : f32 to vector<16x64xf32>
    %143 = arith.mulf %139, %142 : vector<16x64xf32>
    %cst_47 = arith.constant 0.000000e+00 : f32
    %144 = vector.broadcast %cst_47 : f32 to vector<16x64xf32>
    %145 = arith.cmpf oge, %143, %144 : vector<16x64xf32>
    %cst_48 = arith.constant 1.000000e+00 : f32
    %cst_49 = arith.constant -1.000000e+00 : f32
    %146 = vector.broadcast %cst_48 : f32 to vector<16x64xf32>
    %147 = vector.broadcast %cst_49 : f32 to vector<16x64xf32>
    %148 = arith.select %145, %146, %147 : vector<16x64xi1>, vector<16x64xf32>
    %149 = math.absf %143 : vector<16x64xf32>
    %cst_50 = arith.constant 0.327591091 : f32
    %150 = vector.broadcast %cst_50 : f32 to vector<16x64xf32>
    %151 = arith.mulf %150, %149 : vector<16x64xf32>
    %cst_51 = arith.constant 1.000000e+00 : f32
    %152 = vector.broadcast %cst_51 : f32 to vector<16x64xf32>
    %153 = arith.addf %152, %151 : vector<16x64xf32>
    %cst_52 = arith.constant 1.000000e+00 : f32
    %154 = vector.broadcast %cst_52 : f32 to vector<16x64xf32>
    %155 = arith.divf %154, %153 : vector<16x64xf32>
    %cst_53 = arith.constant 1.06140542 : f32
    %156 = vector.broadcast %cst_53 : f32 to vector<16x64xf32>
    %157 = arith.mulf %156, %155 : vector<16x64xf32>
    %cst_54 = arith.constant -1.45315206 : f32
    %158 = vector.broadcast %cst_54 : f32 to vector<16x64xf32>
    %159 = arith.addf %157, %158 : vector<16x64xf32>
    %160 = arith.mulf %159, %155 : vector<16x64xf32>
    %cst_55 = arith.constant 1.42141378 : f32
    %161 = vector.broadcast %cst_55 : f32 to vector<16x64xf32>
    %162 = arith.addf %160, %161 : vector<16x64xf32>
    %163 = arith.mulf %162, %155 : vector<16x64xf32>
    %cst_56 = arith.constant -0.284496725 : f32
    %164 = vector.broadcast %cst_56 : f32 to vector<16x64xf32>
    %165 = arith.addf %163, %164 : vector<16x64xf32>
    %166 = arith.mulf %165, %155 : vector<16x64xf32>
    %cst_57 = arith.constant 0.254829586 : f32
    %167 = vector.broadcast %cst_57 : f32 to vector<16x64xf32>
    %168 = arith.addf %166, %167 : vector<16x64xf32>
    %169 = arith.mulf %168, %155 : vector<16x64xf32>
    %cst_58 = arith.constant 0.000000e+00 : f32
    %170 = vector.broadcast %cst_58 : f32 to vector<16x64xf32>
    %171 = arith.subf %170, %149 : vector<16x64xf32>
    %172 = arith.mulf %171, %149 : vector<16x64xf32>
    %173 = math.exp %172 : vector<16x64xf32>
    %174 = arith.mulf %169, %173 : vector<16x64xf32>
    %cst_59 = arith.constant 1.000000e+00 : f32
    %175 = vector.broadcast %cst_59 : f32 to vector<16x64xf32>
    %176 = arith.subf %175, %174 : vector<16x64xf32>
    %177 = arith.mulf %148, %176 : vector<16x64xf32>
    %cst_60 = arith.constant 1.000000e+00 : f32
    %178 = vector.broadcast %cst_60 : f32 to vector<16x64xf32>
    %179 = arith.addf %178, %177 : vector<16x64xf32>
    %180 = arith.mulf %141, %179 : vector<16x64xf32>
    %c128 = arith.constant 128 : index
    %c0_61 = arith.constant 0 : index
    %181 = vector.load %arg1[%c128, %c0_61] : memref<192x128xf32, #tpu.memory_space<vmem>>, vector<64x32xf32>
    %cst_62 = arith.constant dense<0.000000e+00> : vector<16x32xf32>
    %182 = tpu.matmul %180, %181, %cst_62 {dimension_numbers = #tpu.dot_dimension_numbers<[1], [0], [0], [1], [0, 0, 1, 1], [], []>} : vector<16x64xf32>, vector<64x32xf32>, vector<16x32xf32> -> vector<16x32xf32>
    %183 = vector.broadcast %10 : vector<1x32xf32> to vector<16x32xf32>
    %184 = arith.addf %182, %183 : vector<16x32xf32>
    %185 = arith.addf %184, %135 : vector<16x32xf32>
    %cst_63 = arith.constant dense<0.000000e+00> : vector<16xf32>
    %186 = vector.multi_reduction <add>, %185, %cst_63 [1] : vector<16x32xf32> to vector<16xf32>
    %187 = vector.shape_cast %186 : vector<16xf32> to vector<16x1xf32>
    %cst_64 = arith.constant 3.200000e+01 : f32
    %188 = vector.broadcast %cst_64 : f32 to vector<16x1xf32>
    %189 = arith.divf %187, %188 : vector<16x1xf32>
    %190 = vector.broadcast %189 : vector<16x1xf32> to vector<16x32xf32>
    %191 = arith.subf %185, %190 : vector<16x32xf32>
    %192 = arith.mulf %191, %191 : vector<16x32xf32>
    %cst_65 = arith.constant dense<0.000000e+00> : vector<16xf32>
    %193 = vector.multi_reduction <add>, %192, %cst_65 [1] : vector<16x32xf32> to vector<16xf32>
    %194 = vector.shape_cast %193 : vector<16xf32> to vector<16x1xf32>
    %cst_66 = arith.constant 3.200000e+01 : f32
    %195 = vector.broadcast %cst_66 : f32 to vector<16x1xf32>
    %196 = arith.divf %194, %195 : vector<16x1xf32>
    %197 = vector.broadcast %189 : vector<16x1xf32> to vector<16x32xf32>
    %198 = arith.subf %185, %197 : vector<16x32xf32>
    %cst_67 = arith.constant 9.99999996E-13 : f32
    %199 = vector.broadcast %cst_67 : f32 to vector<16x1xf32>
    %200 = arith.addf %196, %199 : vector<16x1xf32>
    %201 = math.rsqrt %200 : vector<16x1xf32>
    %202 = vector.broadcast %201 : vector<16x1xf32> to vector<16x32xf32>
    %203 = arith.mulf %198, %202 : vector<16x32xf32>
    %204 = vector.broadcast %11 : vector<1x32xf32> to vector<16x32xf32>
    %205 = arith.mulf %203, %204 : vector<16x32xf32>
    %206 = vector.broadcast %12 : vector<1x32xf32> to vector<16x32xf32>
    %207 = arith.addf %205, %206 : vector<16x32xf32>
    %c0_68 = arith.constant 0 : index
    %c0_69 = arith.constant 0 : index
    %208 = vector.load %arg3[%c0_68, %c0_69] : memref<16x32xf32, #tpu.memory_space<vmem>>, vector<16x32xf32>
    tpu.vector_store %arg3[%c0_68, %c0_69], %207 {strides = array<i32>} : memref<16x32xf32, #tpu.memory_space<vmem>>, vector<16x32xf32>,
    return
  }
}

</mosaic_0001>

<llo_original>
// kernel: ernie_layer.1
$region0: #{ernie_layer.1}
  #allocation0 [shape = 'u32[]', space=smem, size = 0x4, offset = 0x4, fixed_abs, tag = 'smem constant byte address 0x4 - core index']
  #allocation1 [shape = 'u32[72,128]{1,0:T(1,128)}', space=vmem, size = 0x9000, scoped, tag = 'internal scratch']
  %s0 = inlined_call_operand.vmem [shape: f32[33,32], index: 0, kind: input, shape index: {}]
  %s1 = inlined_call_operand.hbm [shape: f32[192,128], index: 1, kind: input, shape index: {}]
  %s2 = inlined_call_operand.vmem [shape: f32[9,128], index: 2, kind: input, shape index: {}]
  %s3 = inlined_call_operand.hbm [shape: f32[16,32], index: 3, kind: output, shape index: {}]
  %s4 = sld [smem:[#allocation0]]
  $region26: #{ernie_layer.1} parent=0
    _
  %s6 = ssub.s32 1, %s4
  %s7 = scalar_select 0, %s6, %s4
  $region1: #{ernie_layer.1} parent=0
    #allocation2 [shape = 'u8[98304]{0}', space=vmem, size = 0x18000, scoped, tag = 'input window, operand 1, single buffered']
    #allocation3 [shape = 's32[1]{0}', space=sflag, size = 0x4, scoped, tag = 'scoped memory for ernie_layer.1']
    #allocation4 [shape = 's32[1]{0}', space=sflag, size = 0x4, scoped, tag = 'scoped memory for ernie_layer.1']
    #allocation5 [shape = 'u8[8192]{0}', space=vmem, size = 0x2000, scoped, tag = 'output window, operand 0, single buffered']
    %8 = vsyncpa [#allocation3], 0
    %9 = vsyncpa [#allocation4], 0
    // Predicated region
    $region2: #{ernie_layer.1} parent=1 // pred_check
      _
    $region3: #{ernie_layer.1} parent=1 // pred_check_branch
      %11 = sbr.rel (0) target = $region5
    $region4: #{ernie_layer.1} parent=1 // pred_region
      _
    $region5: #{ernie_layer.1} parent=1 // pred_fallthru
      _
    // Predicated region
    $region6: #{ernie_layer.1} parent=1 // pred_check
      _
    $region7: #{ernie_layer.1} parent=1 // pred_check_branch
      %13 = sbr.rel (0) target = $region9
    $region8: #{ernie_layer.1} parent=1 // pred_region
      %15 = vsyncadd [#allocation3], 0
      %s16 = sshll.u32 %s1, 4
      %s17 = int_to_ptr.hbm [resolvable:$true] %s16
      %s18 = sshll.u32 [#allocation2], 4
      %s19 = int_to_ptr.vmem [resolvable:$true] %s18
      %24 = dma.hbm_to_vmem [thread:$0]  %s17, 3072, %s19, [#allocation3], 128, 128, 8
    $region9: #{ernie_layer.1} parent=1 // pred_fallthru
      _
    // Predicated region
    $region10: #{ernie_layer.1} parent=1 // pred_check
      _
    $region11: #{ernie_layer.1} parent=1 // pred_check_branch
      %26 = sbr.rel (0) target = $region13
    $region12: #{ernie_layer.1} parent=1 // pred_region
      _
    $region13: #{ernie_layer.1} parent=1 // pred_fallthru
      _
    // Predicated region
    $region14: #{ernie_layer.1} parent=1 // pred_check
      _
    $region15: #{ernie_layer.1} parent=1 // pred_check_branch
      %28 = sbr.rel (0) target = $region17
    $region16: #{ernie_layer.1} parent=1 // pred_region
      %30 = dma.done [#allocation3], 3072
    $region17: #{ernie_layer.1} parent=1 // pred_fallthru
      _
    %v31 = vld [vmem:[%s0] sm:$0xff]
    %v32 = vld [vmem:[%s0 + $0x8] sm:$0xff]
    %v33 = vld [vmem:[%s0 + $0x10] sm:$0xff]
    %v34 = vld [vmem:[%s0 + $0x18] sm:$0xff]
    %v35 = vld [vmem:[%s0 + $0x20] sm:$0x1]
    %v36 = vld [vmem:[%s2] sm:$0xff]
    %v37 = vld [vmem:[%s2 + $0x8] sm:$0x1]
    %v38 = vlaneseq
    %v39 = vshrl.u32 %v38, 7
    %v40 = vadd.s32 %v39, 8
    %v41 = vlaneseq
    %v42 = vand.u32 %v41, 127
    %v43 = vshra.s32 %v39, 3
    %v44 = vshra.s32 %v40, 3
    %v45 = vshra.s32 %v42, 3
    %vm46 = vcmp.ne.s32.totalorder %v43, %v45
    %vm47 = vcmp.ne.s32.totalorder %v44, %v45
    %vm48 = vcmp.gt.f32.partialorder %v35, 0.5
    %v49 = vsel %vm48, 1, 0
    %v50 = vperm.slane %v49, 0
    %vm51 = vcmp.eq.s32.totalorder %v50, 1
    %vm52 = vmor %vm46, %vm51
    %vm53 = vmor %vm47, %vm51
    %v54 = vsel %vm52, -1e+09, 0.0
    %v55 = vsel %vm53, -1e+09, 0.0
    %v56 = vld [vmem:[#allocation2] sm:$0xff]
    %v57 = vld [vmem:[#allocation2 + $0x8] sm:$0xff]
    %v58 = vld [vmem:[#allocation2 + $0x10] sm:$0xff]
    %v59 = vld [vmem:[#allocation2 + $0x18] sm:$0xff]
    %v60 = vperm.slane %v36, 0
    %vm61 = vcmask 261120
    %v63 = vsel %vm61, %v31, 0
    %v66 = vsel %vm61, %v32, 0
    %68 = vmatpush.msra.mxu0 0.0
    %69 = vmatpush.msra.mxu0 0.0
    %70 = vmatpush.msra.mxu0 0.0
    %71 = vmatpush.msra.mxu0 0.0
    %72 = vmatpush.msra.mxu0 0.0
    %73 = vmatpush.msra.mxu0 0.0
    %74 = vmatpush.msra.mxu0 0.0
    %75 = vmatpush.msra.mxu0 0.0
    %76 = vmatpush.msra.mxu0 0.0
    %77 = vmatpush.msra.mxu0 0.0
    %78 = vmatpush.msra.mxu0 0.0
    %79 = vmatpush.msra.mxu0 0.0
    %80 = vmatpush.msra.mxu0 %v59
    %81 = vmatpush.msra.mxu0 %v58
    %82 = vmatpush.msra.mxu0 %v57
    %83 = vmatpush.msra.mxu0 %v56
    %84 = vmatmul.f32.gmra.mxu0 %v63
    %v85 = vpop.f32.mrf.mxu0
    %v86 = vadd.f32 %v60, %v85
    %87 = vmatmul.f32.gmra.mxu0 %v66
    %v88 = vpop.f32.mrf.mxu0
    %v89 = vadd.f32 %v60, %v88
    %90 = vdwg.mxu0
    %v91 = vperm.slane %v36, 1
    %v92 = vadd.f32 %v33, %v91
    %v93 = vadd.f32 %v34, %v91
    %96 = vrot.lane.b32.xlu0 %v86, 96
    %v97 = vpop.permute.xlu0 %96
    %98 = vrot.lane.b32.xlu0 %v89, 96
    %v99 = vpop.permute.xlu0 %98
    %vm100 = vcmask 64512
    %v101 = vsel %vm100, %v86, 0
    %v103 = vsel %vm100, %v89, 0
    %v105 = vsel %vm100, %v97, 0
    %v107 = vsel %vm100, %v99, 0
    %109 = vmatpush.xpose.msra.mxu0 0.0
    %110 = vmatpush.xpose.msra.mxu0 0.0
    %111 = vmatpush.xpose.msra.mxu0 0.0
    %112 = vmatpush.xpose.msra.mxu0 0.0
    %113 = vmatpush.xpose.msra.mxu0 0.0
    %114 = vmatpush.xpose.msra.mxu0 0.0
    %115 = vmatpush.xpose.msra.mxu0 0.0
    %116 = vmatpush.xpose.msra.mxu0 0.0
    %117 = vmatpush.xpose.msra.mxu0 0.0
    %118 = vmatpush.xpose.msra.mxu0 0.0
    %119 = vmatpush.xpose.msra.mxu0 0.0
    %120 = vmatpush.xpose.msra.mxu0 0.0
    %121 = vmatpush.xpose.msra.mxu0 0.0
    %122 = vmatpush.xpose.msra.mxu0 0.0
    %123 = vmatpush.xpose.msra.mxu0 %v107
    %124 = vmatpush.xpose.msra.mxu0 %v105
    %125 = vmatmul.f32.gmra.mxu0 %v101
    %v126 = vpop.f32.mrf.mxu0
    %v127 = vadd.f32 %v54, %v126
    %128 = vmatmul.f32.gmra.mxu0 %v103
    %v129 = vpop.f32.mrf.mxu0
    %v130 = vadd.f32 %v55, %v129
    %131 = vdwg.mxu0
    %vm132 = vcmask 130048
    %v133 = vsel %vm132, %v127, -inf
    %134 = vmax.xlane.f32.xlu0 %v133
    %v135 = vpop.xlane.xlu0 %134
    %v136 = vsel %vm132, %v130, -inf
    %137 = vmax.xlane.f32.xlu0 %v136
    %v138 = vpop.xlane.xlu0 %137
    %v139 = vsub.f32 %v127, %v135
    %v140 = vsub.f32 %v130, %v138
    %v141 = vmul.f32 %v139, 1.442695
    %v142 = vpow.pop %v141
    %v143 = vmul.f32 %v140, 1.442695
    %v144 = vpow.pop %v143
    %v145 = vsel %vm132, %v142, 0.0
    %146 = vadd.xlane.f32.xlu0 %v145
    %v147 = vpop.xlane.xlu0 %146
    %v148 = vsel %vm132, %v144, 0.0
    %149 = vadd.xlane.f32.xlu0 %v148
    %v150 = vpop.xlane.xlu0 %149
    %v151 = vrcp.pop %v147
    %v152 = vrcp.pop %v150
    %v153 = vmul.f32 %v142, %v151
    %v154 = vmul.f32 %v144, %v152
    %155 = vrot.lane.b32.xlu0 %v86, 64
    %v156 = vpop.permute.xlu0 %155
    %157 = vrot.lane.b32.xlu0 %v89, 64
    %v158 = vpop.permute.xlu0 %157
    %v162 = vsel %vm132, %v153, 0
    %v165 = vsel %vm132, %v154, 0
    %167 = vmatpush.msra.mxu0 0.0
    %168 = vmatpush.msra.mxu0 0.0
    %169 = vmatpush.msra.mxu0 0.0
    %170 = vmatpush.msra.mxu0 0.0
    %171 = vmatpush.msra.mxu0 0.0
    %172 = vmatpush.msra.mxu0 0.0
    %173 = vmatpush.msra.mxu0 0.0
    %174 = vmatpush.msra.mxu0 0.0
    %175 = vmatpush.msra.mxu0 0.0
    %176 = vmatpush.msra.mxu0 0.0
    %177 = vmatpush.msra.mxu0 0.0
    %178 = vmatpush.msra.mxu0 0.0
    %179 = vmatpush.msra.mxu0 0.0
    %180 = vmatpush.msra.mxu0 0.0
    %181 = vmatpush.msra.mxu0 %v158
    %182 = vmatpush.msra.mxu0 %v156
    %183 = vmatmul.f32.gmra.mxu0 %v162
    %v184 = vpop.f32.mrf.mxu0
    %v185 = vadd.f32 0.0, %v184
    %186 = vmatmul.f32.gmra.mxu0 %v165
    %v187 = vpop.f32.mrf.mxu0
    %v188 = vadd.f32 0.0, %v187
    %189 = vdwg.mxu0
    %v190 = vld [vmem:[#allocation2 + $0x20] sm:$0xff]
    %v192 = vsel %vm100, %v185, 0
    %v195 = vsel %vm100, %v188, 0
    %197 = vmatpush.msra.mxu0 0.0
    %198 = vmatpush.msra.mxu0 0.0
    %199 = vmatpush.msra.mxu0 0.0
    %200 = vmatpush.msra.mxu0 0.0
    %201 = vmatpush.msra.mxu0 0.0
    %202 = vmatpush.msra.mxu0 0.0
    %203 = vmatpush.msra.mxu0 0.0
    %204 = vmatpush.msra.mxu0 0.0
    %205 = vmatpush.msra.mxu0 0.0
    %206 = vmatpush.msra.mxu0 0.0
    %207 = vmatpush.msra.mxu0 0.0
    %208 = vmatpush.msra.mxu0 0.0
    %209 = vmatpush.msra.mxu0 0.0
    %210 = vmatpush.msra.mxu0 0.0
    %211 = vmatpush.msra.mxu0 0.0
    %212 = vmatpush.msra.mxu0 %v190
    %213 = vmatmul.f32.gmra.mxu0 %v192
    %v214 = vpop.f32.mrf.mxu0
    %v215 = vadd.f32 0.0, %v214
    %216 = vmatmul.f32.gmra.mxu0 %v195
    %v217 = vpop.f32.mrf.mxu0
    %v218 = vadd.f32 0.0, %v217
    %219 = vdwg.mxu0
    %v220 = vadd.f32 %v92, %v215
    %v221 = vadd.f32 %v93, %v218
    %222 = vrot.lane.b32.xlu0 %v86, 120
    %v223 = vpop.permute.xlu0 %222
    %224 = vrot.lane.b32.xlu0 %v89, 120
    %v225 = vpop.permute.xlu0 %224
    %226 = vrot.lane.b32.xlu0 %v86, 88
    %v227 = vpop.permute.xlu0 %226
    %228 = vrot.lane.b32.xlu0 %v89, 88
    %v229 = vpop.permute.xlu0 %228
    %v230 = vsel %vm100, %v223, 0
    %v232 = vsel %vm100, %v225, 0
    %v234 = vsel %vm100, %v227, 0
    %v236 = vsel %vm100, %v229, 0
    %238 = vmatpush.xpose.msra.mxu0 0.0
    %239 = vmatpush.xpose.msra.mxu0 0.0
    %240 = vmatpush.xpose.msra.mxu0 0.0
    %241 = vmatpush.xpose.msra.mxu0 0.0
    %242 = vmatpush.xpose.msra.mxu0 0.0
    %243 = vmatpush.xpose.msra.mxu0 0.0
    %244 = vmatpush.xpose.msra.mxu0 0.0
    %245 = vmatpush.xpose.msra.mxu0 0.0
    %246 = vmatpush.xpose.msra.mxu0 0.0
    %247 = vmatpush.xpose.msra.mxu0 0.0
    %248 = vmatpush.xpose.msra.mxu0 0.0
    %249 = vmatpush.xpose.msra.mxu0 0.0
    %250 = vmatpush.xpose.msra.mxu0 0.0
    %251 = vmatpush.xpose.msra.mxu0 0.0
    %252 = vmatpush.xpose.msra.mxu0 %v236
    %253 = vmatpush.xpose.msra.mxu0 %v234
    %254 = vmatmul.f32.gmra.mxu0 %v230
    %v255 = vpop.f32.mrf.mxu0
    %v256 = vadd.f32 %v54, %v255
    %257 = vmatmul.f32.gmra.mxu0 %v232
    %v258 = vpop.f32.mrf.mxu0
    %v259 = vadd.f32 %v55, %v258
    %260 = vdwg.mxu0
    %v261 = vsel %vm132, %v256, -inf
    %262 = vmax.xlane.f32.xlu0 %v261
    %v263 = vpop.xlane.xlu0 %262
    %v264 = vsel %vm132, %v259, -inf
    %265 = vmax.xlane.f32.xlu0 %v264
    %v266 = vpop.xlane.xlu0 %265
    %v267 = vsub.f32 %v256, %v263
    %v268 = vsub.f32 %v259, %v266
    %v269 = vmul.f32 %v267, 1.442695
    %v270 = vpow.pop %v269
    %v271 = vmul.f32 %v268, 1.442695
    %v272 = vpow.pop %v271
    %v273 = vsel %vm132, %v270, 0.0
    %274 = vadd.xlane.f32.xlu0 %v273
    %v275 = vpop.xlane.xlu0 %274
    %v276 = vsel %vm132, %v272, 0.0
    %277 = vadd.xlane.f32.xlu0 %v276
    %v278 = vpop.xlane.xlu0 %277
    %v279 = vrcp.pop %v275
    %v280 = vrcp.pop %v278
    %v281 = vmul.f32 %v270, %v279
    %v282 = vmul.f32 %v272, %v280
    %283 = vrot.lane.b32.xlu0 %v86, 56
    %v284 = vpop.permute.xlu0 %283
    %285 = vrot.lane.b32.xlu0 %v89, 56
    %v286 = vpop.permute.xlu0 %285
    %v290 = vsel %vm132, %v281, 0
    %v293 = vsel %vm132, %v282, 0
    %295 = vmatpush.msra.mxu0 0.0
    %296 = vmatpush.msra.mxu0 0.0
    %297 = vmatpush.msra.mxu0 0.0
    %298 = vmatpush.msra.mxu0 0.0
    %299 = vmatpush.msra.mxu0 0.0
    %300 = vmatpush.msra.mxu0 0.0
    %301 = vmatpush.msra.mxu0 0.0
    %302 = vmatpush.msra.mxu0 0.0
    %303 = vmatpush.msra.mxu0 0.0
    %304 = vmatpush.msra.mxu0 0.0
    %305 = vmatpush.msra.mxu0 0.0
    %306 = vmatpush.msra.mxu0 0.0
    %307 = vmatpush.msra.mxu0 0.0
    %308 = vmatpush.msra.mxu0 0.0
    %309 = vmatpush.msra.mxu0 %v286
    %310 = vmatpush.msra.mxu0 %v284
    %311 = vmatmul.f32.gmra.mxu0 %v290
    %v312 = vpop.f32.mrf.mxu0
    %v313 = vadd.f32 0.0, %v312
    %314 = vmatmul.f32.gmra.mxu0 %v293
    %v315 = vpop.f32.mrf.mxu0
    %v316 = vadd.f32 0.0, %v315
    %317 = vdwg.mxu0
    %v318 = vld [vmem:[#allocation2 + $0x28] sm:$0xff]
    %v320 = vsel %vm100, %v313, 0
    %v323 = vsel %vm100, %v316, 0
    %325 = vmatpush.msra.mxu0 0.0
    %326 = vmatpush.msra.mxu0 0.0
    %327 = vmatpush.msra.mxu0 0.0
    %328 = vmatpush.msra.mxu0 0.0
    %329 = vmatpush.msra.mxu0 0.0
    %330 = vmatpush.msra.mxu0 0.0
    %331 = vmatpush.msra.mxu0 0.0
    %332 = vmatpush.msra.mxu0 0.0
    %333 = vmatpush.msra.mxu0 0.0
    %334 = vmatpush.msra.mxu0 0.0
    %335 = vmatpush.msra.mxu0 0.0
    %336 = vmatpush.msra.mxu0 0.0
    %337 = vmatpush.msra.mxu0 0.0
    %338 = vmatpush.msra.mxu0 0.0
    %339 = vmatpush.msra.mxu0 0.0
    %340 = vmatpush.msra.mxu0 %v318
    %341 = vmatmul.f32.gmra.mxu0 %v320
    %v342 = vpop.f32.mrf.mxu0
    %v343 = vadd.f32 0.0, %v342
    %344 = vmatmul.f32.gmra.mxu0 %v323
    %v345 = vpop.f32.mrf.mxu0
    %v346 = vadd.f32 0.0, %v345
    %347 = vdwg.mxu0
    %v348 = vadd.f32 %v220, %v343
    %v349 = vadd.f32 %v221, %v346
    %350 = vrot.lane.b32.xlu0 %v86, 112
    %v351 = vpop.permute.xlu0 %350
    %352 = vrot.lane.b32.xlu0 %v89, 112
    %v353 = vpop.permute.xlu0 %352
    %354 = vrot.lane.b32.xlu0 %v86, 80
    %v355 = vpop.permute.xlu0 %354
    %356 = vrot.lane.b32.xlu0 %v89, 80
    %v357 = vpop.permute.xlu0 %356
    %v358 = vsel %vm100, %v351, 0
    %v360 = vsel %vm100, %v353, 0
    %v362 = vsel %vm100, %v355, 0
    %v364 = vsel %vm100, %v357, 0
    %366 = vmatpush.xpose.msra.mxu0 0.0
    %367 = vmatpush.xpose.msra.mxu0 0.0
    %368 = vmatpush.xpose.msra.mxu0 0.0
    %369 = vmatpush.xpose.msra.mxu0 0.0
    %370 = vmatpush.xpose.msra.mxu0 0.0
    %371 = vmatpush.xpose.msra.mxu0 0.0
    %372 = vmatpush.xpose.msra.mxu0 0.0
    %373 = vmatpush.xpose.msra.mxu0 0.0
    %374 = vmatpush.xpose.msra.mxu0 0.0
    %375 = vmatpush.xpose.msra.mxu0 0.0
    %376 = vmatpush.xpose.msra.mxu0 0.0
    %377 = vmatpush.xpose.msra.mxu0 0.0
    %378 = vmatpush.xpose.msra.mxu0 0.0
    %379 = vmatpush.xpose.msra.mxu0 0.0
    %380 = vmatpush.xpose.msra.mxu0 %v364
    %381 = vmatpush.xpose.msra.mxu0 %v362
    %382 = vmatmul.f32.gmra.mxu0 %v358
    %v383 = vpop.f32.mrf.mxu0
    %v384 = vadd.f32 %v54, %v383
    %385 = vmatmul.f32.gmra.mxu0 %v360
    %v386 = vpop.f32.mrf.mxu0
    %v387 = vadd.f32 %v55, %v386
    %388 = vdwg.mxu0
    %v389 = vsel %vm132, %v384, -inf
    %390 = vmax.xlane.f32.xlu0 %v389
    %v391 = vpop.xlane.xlu0 %390
    %v392 = vsel %vm132, %v387, -inf
    %393 = vmax.xlane.f32.xlu0 %v392
    %v394 = vpop.xlane.xlu0 %393
    %v395 = vsub.f32 %v384, %v391
    %v396 = vsub.f32 %v387, %v394
    %v397 = vmul.f32 %v395, 1.442695
    %v398 = vpow.pop %v397
    %v399 = vmul.f32 %v396, 1.442695
    %v400 = vpow.pop %v399
    %v401 = vsel %vm132, %v398, 0.0
    %402 = vadd.xlane.f32.xlu0 %v401
    %v403 = vpop.xlane.xlu0 %402
    %v404 = vsel %vm132, %v400, 0.0
    %405 = vadd.xlane.f32.xlu0 %v404
    %v406 = vpop.xlane.xlu0 %405
    %v407 = vrcp.pop %v403
    %v408 = vrcp.pop %v406
    %v409 = vmul.f32 %v398, %v407
    %v410 = vmul.f32 %v400, %v408
    %411 = vrot.lane.b32.xlu0 %v86, 48
    %v412 = vpop.permute.xlu0 %411
    %413 = vrot.lane.b32.xlu0 %v89, 48
    %v414 = vpop.permute.xlu0 %413
    %v418 = vsel %vm132, %v409, 0
    %v421 = vsel %vm132, %v410, 0
    %423 = vmatpush.msra.mxu0 0.0
    %424 = vmatpush.msra.mxu0 0.0
    %425 = vmatpush.msra.mxu0 0.0
    %426 = vmatpush.msra.mxu0 0.0
    %427 = vmatpush.msra.mxu0 0.0
    %428 = vmatpush.msra.mxu0 0.0
    %429 = vmatpush.msra.mxu0 0.0
    %430 = vmatpush.msra.mxu0 0.0
    %431 = vmatpush.msra.mxu0 0.0
    %432 = vmatpush.msra.mxu0 0.0
    %433 = vmatpush.msra.mxu0 0.0
    %434 = vmatpush.msra.mxu0 0.0
    %435 = vmatpush.msra.mxu0 0.0
    %436 = vmatpush.msra.mxu0 0.0
    %437 = vmatpush.msra.mxu0 %v414
    %438 = vmatpush.msra.mxu0 %v412
    %439 = vmatmul.f32.gmra.mxu0 %v418
    %v440 = vpop.f32.mrf.mxu0
    %v441 = vadd.f32 0.0, %v440
    %442 = vmatmul.f32.gmra.mxu0 %v421
    %v443 = vpop.f32.mrf.mxu0
    %v444 = vadd.f32 0.0, %v443
    %445 = vdwg.mxu0
    %v446 = vld [vmem:[#allocation2 + $0x30] sm:$0xff]
    %v448 = vsel %vm100, %v441, 0
    %v451 = vsel %vm100, %v444, 0
    %453 = vmatpush.msra.mxu0 0.0
    %454 = vmatpush.msra.mxu0 0.0
    %455 = vmatpush.msra.mxu0 0.0
    %456 = vmatpush.msra.mxu0 0.0
    %457 = vmatpush.msra.mxu0 0.0
    %458 = vmatpush.msra.mxu0 0.0
    %459 = vmatpush.msra.mxu0 0.0
    %460 = vmatpush.msra.mxu0 0.0
    %461 = vmatpush.msra.mxu0 0.0
    %462 = vmatpush.msra.mxu0 0.0
    %463 = vmatpush.msra.mxu0 0.0
    %464 = vmatpush.msra.mxu0 0.0
    %465 = vmatpush.msra.mxu0 0.0
    %466 = vmatpush.msra.mxu0 0.0
    %467 = vmatpush.msra.mxu0 0.0
    %468 = vmatpush.msra.mxu0 %v446
    %469 = vmatmul.f32.gmra.mxu0 %v448
    %v470 = vpop.f32.mrf.mxu0
    %v471 = vadd.f32 0.0, %v470
    %472 = vmatmul.f32.gmra.mxu0 %v451
    %v473 = vpop.f32.mrf.mxu0
    %v474 = vadd.f32 0.0, %v473
    %475 = vdwg.mxu0
    %v476 = vadd.f32 %v348, %v471
    %v477 = vadd.f32 %v349, %v474
    %478 = vrot.lane.b32.xlu0 %v86, 104
    %v479 = vpop.permute.xlu0 %478
    %480 = vrot.lane.b32.xlu0 %v89, 104
    %v481 = vpop.permute.xlu0 %480
    %482 = vrot.lane.b32.xlu0 %v86, 72
    %v483 = vpop.permute.xlu0 %482
    %484 = vrot.lane.b32.xlu0 %v89, 72
    %v485 = vpop.permute.xlu0 %484
    %v486 = vsel %vm100, %v479, 0
    %v488 = vsel %vm100, %v481, 0
    %v490 = vsel %vm100, %v483, 0
    %v492 = vsel %vm100, %v485, 0
    %494 = vmatpush.xpose.msra.mxu0 0.0
    %495 = vmatpush.xpose.msra.mxu0 0.0
    %496 = vmatpush.xpose.msra.mxu0 0.0
    %497 = vmatpush.xpose.msra.mxu0 0.0
    %498 = vmatpush.xpose.msra.mxu0 0.0
    %499 = vmatpush.xpose.msra.mxu0 0.0
    %500 = vmatpush.xpose.msra.mxu0 0.0
    %501 = vmatpush.xpose.msra.mxu0 0.0
    %502 = vmatpush.xpose.msra.mxu0 0.0
    %503 = vmatpush.xpose.msra.mxu0 0.0
    %504 = vmatpush.xpose.msra.mxu0 0.0
    %505 = vmatpush.xpose.msra.mxu0 0.0
    %506 = vmatpush.xpose.msra.mxu0 0.0
    %507 = vmatpush.xpose.msra.mxu0 0.0
    %508 = vmatpush.xpose.msra.mxu0 %v492
    %509 = vmatpush.xpose.msra.mxu0 %v490
    %510 = vmatmul.f32.gmra.mxu0 %v486
    %v511 = vpop.f32.mrf.mxu0
    %v512 = vadd.f32 %v54, %v511
    %513 = vmatmul.f32.gmra.mxu0 %v488
    %v514 = vpop.f32.mrf.mxu0
    %v515 = vadd.f32 %v55, %v514
    %516 = vdwg.mxu0
    %v517 = vsel %vm132, %v512, -inf
    %518 = vmax.xlane.f32.xlu0 %v517
    %v519 = vpop.xlane.xlu0 %518
    %v520 = vsel %vm132, %v515, -inf
    %521 = vmax.xlane.f32.xlu0 %v520
    %v522 = vpop.xlane.xlu0 %521
    %v523 = vsub.f32 %v512, %v519
    %v524 = vsub.f32 %v515, %v522
    %v525 = vmul.f32 %v523, 1.442695
    %v526 = vpow.pop %v525
    %v527 = vmul.f32 %v524, 1.442695
    %v528 = vpow.pop %v527
    %v529 = vsel %vm132, %v526, 0.0
    %530 = vadd.xlane.f32.xlu0 %v529
    %v531 = vpop.xlane.xlu0 %530
    %v532 = vsel %vm132, %v528, 0.0
    %533 = vadd.xlane.f32.xlu0 %v532
    %v534 = vpop.xlane.xlu0 %533
    %v535 = vrcp.pop %v531
    %v536 = vrcp.pop %v534
    %v537 = vmul.f32 %v526, %v535
    %v538 = vmul.f32 %v528, %v536
    %539 = vrot.lane.b32.xlu0 %v86, 40
    %v540 = vpop.permute.xlu0 %539
    %541 = vrot.lane.b32.xlu0 %v89, 40
    %v542 = vpop.permute.xlu0 %541
    %v546 = vsel %vm132, %v537, 0
    %v549 = vsel %vm132, %v538, 0
    %551 = vmatpush.msra.mxu0 0.0
    %552 = vmatpush.msra.mxu0 0.0
    %553 = vmatpush.msra.mxu0 0.0
    %554 = vmatpush.msra.mxu0 0.0
    %555 = vmatpush.msra.mxu0 0.0
    %556 = vmatpush.msra.mxu0 0.0
    %557 = vmatpush.msra.mxu0 0.0
    %558 = vmatpush.msra.mxu0 0.0
    %559 = vmatpush.msra.mxu0 0.0
    %560 = vmatpush.msra.mxu0 0.0
    %561 = vmatpush.msra.mxu0 0.0
    %562 = vmatpush.msra.mxu0 0.0
    %563 = vmatpush.msra.mxu0 0.0
    %564 = vmatpush.msra.mxu0 0.0
    %565 = vmatpush.msra.mxu0 %v542
    %566 = vmatpush.msra.mxu0 %v540
    %567 = vmatmul.f32.gmra.mxu0 %v546
    %v568 = vpop.f32.mrf.mxu0
    %v569 = vadd.f32 0.0, %v568
    %570 = vmatmul.f32.gmra.mxu0 %v549
    %v571 = vpop.f32.mrf.mxu0
    %v572 = vadd.f32 0.0, %v571
    %573 = vdwg.mxu0
    %v574 = vld [vmem:[#allocation2 + $0x38] sm:$0xff]
    %v576 = vsel %vm100, %v569, 0
    %v579 = vsel %vm100, %v572, 0
    %581 = vmatpush.msra.mxu0 0.0
    %582 = vmatpush.msra.mxu0 0.0
    %583 = vmatpush.msra.mxu0 0.0
    %584 = vmatpush.msra.mxu0 0.0
    %585 = vmatpush.msra.mxu0 0.0
    %586 = vmatpush.msra.mxu0 0.0
    %587 = vmatpush.msra.mxu0 0.0
    %588 = vmatpush.msra.mxu0 0.0
    %589 = vmatpush.msra.mxu0 0.0
    %590 = vmatpush.msra.mxu0 0.0
    %591 = vmatpush.msra.mxu0 0.0
    %592 = vmatpush.msra.mxu0 0.0
    %593 = vmatpush.msra.mxu0 0.0
    %594 = vmatpush.msra.mxu0 0.0
    %595 = vmatpush.msra.mxu0 0.0
    %596 = vmatpush.msra.mxu0 %v574
    %597 = vmatmul.f32.gmra.mxu0 %v576
    %v598 = vpop.f32.mrf.mxu0
    %v599 = vadd.f32 0.0, %v598
    %600 = vmatmul.f32.gmra.mxu0 %v579
    %v601 = vpop.f32.mrf.mxu0
    %v602 = vadd.f32 0.0, %v601
    %603 = vdwg.mxu0
    %v604 = vadd.f32 %v476, %v599
    %v605 = vadd.f32 %v477, %v602
    %v606 = vld [vmem:[#allocation2 + $0x40] sm:$0xff]
    %v607 = vld [vmem:[#allocation2 + $0x48] sm:$0xff]
    %v608 = vld [vmem:[#allocation2 + $0x50] sm:$0xff]
    %v609 = vld [vmem:[#allocation2 + $0x58] sm:$0xff]
    %v610 = vperm.slane %v36, 2
    %v612 = vsel %vm61, %v604, 0
    %v615 = vsel %vm61, %v605, 0
    %617 = vmatpush.msra.mxu0 0.0
    %618 = vmatpush.msra.mxu0 0.0
    %619 = vmatpush.msra.mxu0 0.0
    %620 = vmatpush.msra.mxu0 0.0
    %621 = vmatpush.msra.mxu0 0.0
    %622 = vmatpush.msra.mxu0 0.0
    %623 = vmatpush.msra.mxu0 0.0
    %624 = vmatpush.msra.mxu0 0.0
    %625 = vmatpush.msra.mxu0 0.0
    %626 = vmatpush.msra.mxu0 0.0
    %627 = vmatpush.msra.mxu0 0.0
    %628 = vmatpush.msra.mxu0 0.0
    %629 = vmatpush.msra.mxu0 %v609
    %630 = vmatpush.msra.mxu0 %v608
    %631 = vmatpush.msra.mxu0 %v607
    %632 = vmatpush.msra.mxu0 %v606
    %633 = vmatmul.f32.gmra.mxu0 %v612
    %v634 = vpop.f32.mrf.mxu0
    %v635 = vadd.f32 %v610, %v634
    %636 = vmatmul.f32.gmra.mxu0 %v615
    %v637 = vpop.f32.mrf.mxu0
    %v638 = vadd.f32 %v610, %v637
    %639 = vdwg.mxu0
    %v640 = vadd.f32 %v635, %v31
    %v641 = vadd.f32 %v638, %v32
    %v642 = vsel %vm61, %v640, 0.0
    %643 = vadd.xlane.f32.xlu0 %v642
    %v644 = vpop.xlane.xlu0 %643
    %v645 = vsel %vm61, %v641, 0.0
    %646 = vadd.xlane.f32.xlu0 %v645
    %v647 = vpop.xlane.xlu0 %646
    %v648 = vrcp.pop 32.0
    %v649 = vmul.f32 32.0, %v648
    %v650 = vsub.f32 1.0, %v649
    %v651 = vmul.f32 %v648, %v650
    %v652 = vadd.f32 %v648, %v651
    %vm653 = vweird.f32 %v648
    %v654 = vsel %vm653, %v648, %v652
    %v655 = vmul.f32 %v644, %v654
    %v656 = vmul.f32 %v647, %v654
    %v657 = vsub.f32 %v640, %v655
    %v658 = vsub.f32 %v641, %v656
    %v659 = vmul.f32 %v657, %v657
    %v660 = vmul.f32 %v658, %v658
    %v661 = vsel %vm61, %v659, 0.0
    %662 = vadd.xlane.f32.xlu0 %v661
    %v663 = vpop.xlane.xlu0 %662
    %v664 = vsel %vm61, %v660, 0.0
    %665 = vadd.xlane.f32.xlu0 %v664
    %v666 = vpop.xlane.xlu0 %665
    %v667 = vmul.f32 %v663, %v654
    %v668 = vmul.f32 %v666, %v654
    %v669 = vadd.f32 %v667, 1e-12
    %v670 = vadd.f32 %v668, 1e-12
    %v671 = vrsqrt.pop %v669
    %v672 = vmul.f32 %v671, %v669
    %v673 = vmul.f32 %v672, %v671
    %v674 = vmul.f32 0.5, %v673
    %v675 = vsub.f32 1.5, %v674
    %v676 = vmul.f32 %v671, %v675
    %vm677 = vweird.f32 %v669
    %vm678 = vweird.f32 %v671
    %vm679 = vmor %vm677, %vm678
    %v680 = vsel %vm679, %v671, %v676
    %v681 = vrsqrt.pop %v670
    %v682 = vmul.f32 %v681, %v670
    %v683 = vmul.f32 %v682, %v681
    %v684 = vmul.f32 0.5, %v683
    %v685 = vsub.f32 1.5, %v684
    %v686 = vmul.f32 %v681, %v685
    %vm687 = vweird.f32 %v670
    %vm688 = vweird.f32 %v681
    %vm689 = vmor %vm687, %vm688
    %v690 = vsel %vm689, %v681, %v686
    %v691 = vmul.f32 %v657, %v680
    %v692 = vmul.f32 %v658, %v690
    %v693 = vperm.slane %v36, 3
    %v694 = vmul.f32 %v691, %v693
    %v695 = vmul.f32 %v692, %v693
    %v696 = vperm.slane %v36, 4
    %v697 = vadd.f32 %v694, %v696
    %v698 = vadd.f32 %v695, %v696
    %v699 = vld [vmem:[#allocation2 + $0x60] sm:$0xff]
    %v700 = vld [vmem:[#allocation2 + $0x68] sm:$0xff]
    %v701 = vld [vmem:[#allocation2 + $0x70] sm:$0xff]
    %v702 = vld [vmem:[#allocation2 + $0x78] sm:$0xff]
    %v703 = vperm.slane %v36, 5
    %v705 = vsel %vm61, %v697, 0
    %v708 = vsel %vm61, %v698, 0
    %710 = vmatpush.msra.mxu0 0.0
    %711 = vmatpush.msra.mxu0 0.0
    %712 = vmatpush.msra.mxu0 0.0
    %713 = vmatpush.msra.mxu0 0.0
    %714 = vmatpush.msra.mxu0 0.0
    %715 = vmatpush.msra.mxu0 0.0
    %716 = vmatpush.msra.mxu0 0.0
    %717 = vmatpush.msra.mxu0 0.0
    %718 = vmatpush.msra.mxu0 0.0
    %719 = vmatpush.msra.mxu0 0.0
    %720 = vmatpush.msra.mxu0 0.0
    %721 = vmatpush.msra.mxu0 0.0
    %722 = vmatpush.msra.mxu0 %v702
    %723 = vmatpush.msra.mxu0 %v701
    %724 = vmatpush.msra.mxu0 %v700
    %725 = vmatpush.msra.mxu0 %v699
    %726 = vmatmul.f32.gmra.mxu0 %v705
    %v727 = vpop.f32.mrf.mxu0
    %v728 = vadd.f32 %v703, %v727
    %729 = vmatmul.f32.gmra.mxu0 %v708
    %v730 = vpop.f32.mrf.mxu0
    %v731 = vadd.f32 %v703, %v730
    %732 = vdwg.mxu0
    %v733 = vmul.f32 %v728, 0.5
    %v734 = vmul.f32 %v731, 0.5
    %v735 = vmul.f32 %v728, 0.70710677
    %v736 = vmul.f32 %v731, 0.70710677
    %vm737 = vcmp.ge.f32.partialorder %v735, 0.0
    %vm738 = vcmp.ge.f32.partialorder %v736, 0.0
    %v739 = vsel %vm737, 1.0, -1.0
    %v740 = vsel %vm738, 1.0, -1.0
    %v741 = vand.u32 2147483647, %v735
    %v742 = vand.u32 2147483647, %v736
    %v743 = vmul.f32 %v741, 0.3275911
    %v744 = vmul.f32 %v742, 0.3275911
    %v745 = vadd.f32 %v743, 1.0
    %v746 = vadd.f32 %v744, 1.0
    %v747 = vrcp.pop %v745
    %v748 = vmul.f32 %v745, %v747
    %v749 = vsub.f32 1.0, %v748
    %v750 = vmul.f32 %v747, %v749
    %v751 = vadd.f32 %v747, %v750
    %vm752 = vweird.f32 %v745
    %vm753 = vweird.f32 %v747
    %vm754 = vmor %vm752, %vm753
    %v755 = vsel %vm754, %v747, %v751
    %v756 = vand.u32 2147483647, %v745
    %vm757 = vcmp.eq.f32.partialorder %v756, 8.507059e+37
    %v758 = vand.u32 %v745, 2147483648
    %v759 = vor.u32 1.1754944e-38, %v758
    %v760 = vsel %vm757, %v759, %v755
    %v761 = vmul.f32 1.0, %v760
    %v762 = vrcp.pop %v746
    %v763 = vmul.f32 %v746, %v762
    %v764 = vsub.f32 1.0, %v763
    %v765 = vmul.f32 %v762, %v764
    %v766 = vadd.f32 %v762, %v765
    %vm767 = vweird.f32 %v746
    %vm768 = vweird.f32 %v762
    %vm769 = vmor %vm767, %vm768
    %v770 = vsel %vm769, %v762, %v766
    %v771 = vand.u32 2147483647, %v746
    %vm772 = vcmp.eq.f32.partialorder %v771, 8.507059e+37
    %v773 = vand.u32 %v746, 2147483648
    %v774 = vor.u32 1.1754944e-38, %v773
    %v775 = vsel %vm772, %v774, %v770
    %v776 = vmul.f32 1.0, %v775
    %v777 = vmul.f32 %v761, 1.0614054
    %v778 = vmul.f32 %v776, 1.0614054
    %v779 = vadd.f32 %v777, -1.4531521
    %v780 = vadd.f32 %v778, -1.4531521
    %v781 = vmul.f32 %v779, %v761
    %v782 = vmul.f32 %v780, %v776
    %v783 = vadd.f32 %v781, 1.4214138
    %v784 = vadd.f32 %v782, 1.4214138
    %v785 = vmul.f32 %v783, %v761
    %v786 = vmul.f32 %v784, %v776
    %v787 = vadd.f32 %v785, -0.28449672
    %v788 = vadd.f32 %v786, -0.28449672
    %v789 = vmul.f32 %v787, %v761
    %v790 = vmul.f32 %v788, %v776
    %v791 = vadd.f32 %v789, 0.2548296
    %v792 = vadd.f32 %v790, 0.2548296
    %v793 = vmul.f32 %v791, %v761
    %v794 = vmul.f32 %v792, %v776
    %v795 = vsub.f32 0.0, %v741
    %v796 = vsub.f32 0.0, %v742
    %v797 = vmul.f32 %v795, %v741
    %v798 = vmul.f32 %v796, %v742
    %v799 = vmul.f32 %v797, 1.442695
    %v800 = vpow.pop %v799
    %v801 = vmul.f32 %v798, 1.442695
    %v802 = vpow.pop %v801
    %v803 = vmul.f32 %v793, %v800
    %v804 = vmul.f32 %v794, %v802
    %v805 = vsub.f32 1.0, %v803
    %v806 = vsub.f32 1.0, %v804
    %v807 = vmul.f32 %v739, %v805
    %v808 = vmul.f32 %v740, %v806
    %v809 = vadd.f32 %v807, 1.0
    %v810 = vadd.f32 %v808, 1.0
    %v811 = vmul.f32 %v733, %v809
    %v812 = vmul.f32 %v734, %v810
    %v813 = vld [vmem:[#allocation2 + $0x80] sm:$0xff]
    %v814 = vld [vmem:[#allocation2 + $0x88] sm:$0xff]
    %v815 = vld [vmem:[#allocation2 + $0x90] sm:$0xff]
    %v816 = vld [vmem:[#allocation2 + $0x98] sm:$0xff]
    %v817 = vld [vmem:[#allocation2 + $0xa0] sm:$0xff]
    %v818 = vld [vmem:[#allocation2 + $0xa8] sm:$0xff]
    %v819 = vld [vmem:[#allocation2 + $0xb0] sm:$0xff]
    %v820 = vld [vmem:[#allocation2 + $0xb8] sm:$0xff]
    %v821 = vperm.slane %v36, 6
    %vm822 = vcmask 523264
    %v824 = vsel %vm822, %v811, 0
    %v827 = vsel %vm822, %v812, 0
    %829 = vmatpush.msra.mxu0 0.0
    %830 = vmatpush.msra.mxu0 0.0
    %831 = vmatpush.msra.mxu0 0.0
    %832 = vmatpush.msra.mxu0 0.0
    %833 = vmatpush.msra.mxu0 0.0
    %834 = vmatpush.msra.mxu0 0.0
    %835 = vmatpush.msra.mxu0 0.0
    %836 = vmatpush.msra.mxu0 0.0
    %837 = vmatpush.msra.mxu0 %v820
    %838 = vmatpush.msra.mxu0 %v819
    %839 = vmatpush.msra.mxu0 %v818
    %840 = vmatpush.msra.mxu0 %v817
    %841 = vmatpush.msra.mxu0 %v816
    %842 = vmatpush.msra.mxu0 %v815
    %843 = vmatpush.msra.mxu0 %v814
    %844 = vmatpush.msra.mxu0 %v813
    %845 = vmatmul.f32.gmra.mxu0 %v824
    %v846 = vpop.f32.mrf.mxu0
    %v847 = vadd.f32 %v821, %v846
    %848 = vmatmul.f32.gmra.mxu0 %v827
    %v849 = vpop.f32.mrf.mxu0
    %v850 = vadd.f32 %v821, %v849
    %851 = vdwg.mxu0
    %v852 = vadd.f32 %v847, %v697
    %v853 = vadd.f32 %v850, %v698
    %v854 = vsel %vm61, %v852, 0.0
    %855 = vadd.xlane.f32.xlu0 %v854
    %v856 = vpop.xlane.xlu0 %855
    %v857 = vsel %vm61, %v853, 0.0
    %858 = vadd.xlane.f32.xlu0 %v857
    %v859 = vpop.xlane.xlu0 %858
    %v860 = vmul.f32 %v856, %v654
    %v861 = vmul.f32 %v859, %v654
    %v862 = vsub.f32 %v852, %v860
    %v863 = vsub.f32 %v853, %v861
    %v864 = vmul.f32 %v862, %v862
    %v865 = vmul.f32 %v863, %v863
    %v866 = vsel %vm61, %v864, 0.0
    %867 = vadd.xlane.f32.xlu0 %v866
    %v868 = vpop.xlane.xlu0 %867
    %v869 = vsel %vm61, %v865, 0.0
    %870 = vadd.xlane.f32.xlu0 %v869
    %v871 = vpop.xlane.xlu0 %870
    %v872 = vmul.f32 %v868, %v654
    %v873 = vmul.f32 %v871, %v654
    %v874 = vadd.f32 %v872, 1e-12
    %v875 = vadd.f32 %v873, 1e-12
    %v876 = vrsqrt.pop %v874
    %v877 = vmul.f32 %v876, %v874
    %v878 = vmul.f32 %v877, %v876
    %v879 = vmul.f32 0.5, %v878
    %v880 = vsub.f32 1.5, %v879
    %v881 = vmul.f32 %v876, %v880
    %vm882 = vweird.f32 %v874
    %vm883 = vweird.f32 %v876
    %vm884 = vmor %vm882, %vm883
    %v885 = vsel %vm884, %v876, %v881
    %v886 = vrsqrt.pop %v875
    %v887 = vmul.f32 %v886, %v875
    %v888 = vmul.f32 %v887, %v886
    %v889 = vmul.f32 0.5, %v888
    %v890 = vsub.f32 1.5, %v889
    %v891 = vmul.f32 %v886, %v890
    %vm892 = vweird.f32 %v875
    %vm893 = vweird.f32 %v886
    %vm894 = vmor %vm892, %vm893
    %v895 = vsel %vm894, %v886, %v891
    %v896 = vmul.f32 %v862, %v885
    %v897 = vmul.f32 %v863, %v895
    %v898 = vperm.slane %v36, 7
    %v899 = vmul.f32 %v896, %v898
    %v900 = vmul.f32 %v897, %v898
    %v901 = vperm.slane %v37, 0
    %v902 = vadd.f32 %v899, %v901
    %v903 = vadd.f32 %v900, %v901
    %904 = vst.msk [vmem:[#allocation5] sm:$0xff] %vm61, %v902
    %905 = vst.msk [vmem:[#allocation5 + $0x8] sm:$0xff] %vm61, %v903
    // Predicated region
    $region18: #{ernie_layer.1} parent=1 // pred_check
      _
    $region19: #{ernie_layer.1} parent=1 // pred_check_branch
      %907 = sbr.rel (0) target = $region21
    $region20: #{ernie_layer.1} parent=1 // pred_region
      %909 = vsyncadd [#allocation4], 0
      %s910 = sshll.u32 [#allocation5], 4
      %s911 = int_to_ptr.vmem [resolvable:$true] %s910
      %s912 = sshll.u32 %s3, 4
      %s913 = int_to_ptr.hbm [resolvable:$true] %s912
      %918 = dma.vmem_to_hbm [thread:$0]  %s911, 256, %s913, [#allocation4], 128, 128, 8
    $region21: #{ernie_layer.1} parent=1 // pred_fallthru
      _
    // Predicated region
    $region22: #{ernie_layer.1} parent=1 // pred_check
      _
    $region23: #{ernie_layer.1} parent=1 // pred_check_branch
      %920 = sbr.rel (0) target = $region25
    $region24: #{ernie_layer.1} parent=1 // pred_region
      %922 = dma.done [#allocation4], 256
    $region25: #{ernie_layer.1} parent=1 // pred_fallthru
      _
    %923 = vsyncpa [#allocation3], 1
    %924 = vsyncpa [#allocation4], 1

</llo_original>
